<compile_context>
chip_gen: v5e
topology: v5e:2x2
jax: 0.10.0
libtpu: 0.0.40
codegen_flags: <defaults>
</compile_context>

<pallas_src>
import math

import numpy as np
import jax
import jax.numpy as jnp
from jax.experimental import pallas as pl
from jax.experimental.pallas import tpu as pltpu


def _round_up(x, m):
    return (x + m - 1) // m * m


def _pad2(a, rows, cols):
    pr, pc = rows - a.shape[0], cols - a.shape[1]
    if pr == 0 and pc == 0:
        return a
    return jnp.pad(a, ((0, pr), (0, pc)))


# ---------------------------------------------------------------------------
# Kernel 1: row-tiled projection / attention prologue (runs once per row tile).
#   x       = elu(miu @ W_miu) * exp(-gamma * relu(sigma @ W_sigma))
#   sigma_p = relu(sigma @ W_sigma)
# ---------------------------------------------------------------------------
def _make_proj_kernel(gamma):
    gamma = float(gamma)  # compile-time constant; no SMEM operand needed

    def kernel(miu_ref, sigma_ref, wmiu_ref, wsig_ref, x_ref, sigma_out_ref):
        miu_p = jnp.dot(miu_ref[...], wmiu_ref[...],
                        preferred_element_type=jnp.float32)
        sig_p = jnp.dot(sigma_ref[...], wsig_ref[...],
                        preferred_element_type=jnp.float32)

        # ELU(alpha=1); clamp avoids exp overflow, EUP handles the exp.
        miu_p = jnp.where(miu_p > 0.0, miu_p,
                          jnp.exp(jnp.minimum(miu_p, 0.0)) - 1.0)
        sig_p = jnp.maximum(sig_p, 0.0)                   # ReLU
        att = jnp.exp(-gamma * sig_p)

        sigma_out_ref[...] = sig_p.astype(sigma_out_ref.dtype)
        x_ref[...] = (miu_p * att).astype(x_ref.dtype)    # narrow RHS for the MXU stream

    return kernel


# ---------------------------------------------------------------------------
# Kernel 2: streamed adjacency aggregation  mean = adj @ x.
#   grid = (rows/TM, cols/TK); adjacency tile (TM, TK) streamed from HBM,
#   x is a single resident VMEM block (DMA'd once), f32 accumulation.
# ---------------------------------------------------------------------------
def _make_agg_kernel(tk, direct_out):
    if direct_out:
        # out dtype is f32: accumulate straight into the resident output block.
        def kernel(adj_ref, x_ref, out_ref):
            k = pl.program_id(1)

            @pl.when(k == 0)
            def _():
                out_ref[...] = jnp.zeros_like(out_ref)

            start = pl.multiple_of(k * tk, tk)
            xs = x_ref[pl.ds(start, tk), :]
            out_ref[...] += jnp.dot(adj_ref[...].astype(xs.dtype), xs,
                                    preferred_element_type=jnp.float32)
        return kernel

    # Narrow output dtype: keep an f32 scratch accumulator, finalize at last k.
    def kernel(adj_ref, x_ref, out_ref, acc_ref):
        k = pl.program_id(1)

        @pl.when(k == 0)
        def _():
            acc_ref[...] = jnp.zeros_like(acc_ref)

        start = pl.multiple_of(k * tk, tk)
        xs = x_ref[pl.ds(start, tk), :]
        acc_ref[...] += jnp.dot(adj_ref[...].astype(xs.dtype), xs,
                                preferred_element_type=jnp.float32)

        @pl.when(k == pl.num_programs(1) - 1)
        def _():
            out_ref[...] = acc_ref[...].astype(out_ref.dtype)

    return kernel


# ---------------------------------------------------------------------------
# Tile planning
# ---------------------------------------------------------------------------
_TK_CANDIDATES = (2048, 1792, 1536, 1280, 1024, 768, 512, 256)


def _plan_tiles(n):
    """Return (padded_rows, row_tile, padded_cols, col_tile)."""
    if n <= 512:
        p = _round_up(n, 8)                    # single-block fast path
        return p, p, p, p

    # Rows: smallest padding among {512, 256}; ties prefer the larger tile.
    best_pr, best_tm = None, None
    for tm in (512, 256):
        pr = _round_up(n, tm)
        if best_pr is None or pr < best_pr:
            best_pr, best_tm = pr, tm

    # Columns (reduction axis of the adjacency stream).
    if n <= 2048:
        pc = _round_up(n, 256)
        return best_pr, best_tm, pc, pc        # single k step

    pcs = [(_round_up(n, tk), tk) for tk in _TK_CANDIDATES]
    min_pc = min(p for p, _ in pcs)
    for pc, tk in pcs:                          # descending tk: biggest tile whose
        if pc <= 1.10 * min_pc:                 # padding is within 10% of the minimum
            return best_pr, best_tm, pc, tk
    return best_pr, best_tm, min_pc, 256        # unreachable fallback


# ---------------------------------------------------------------------------
# Wrapper
# ---------------------------------------------------------------------------
def ggcl_d(miu, sigma, weight_miu, weight_sigma, adj_norm1, adj_norm2=None,
           gamma=1.0, mxu_dtype=jnp.bfloat16):
    """Pallas forward of GGCL_D (inference mode).

    adj_norm2 is accepted for signature parity but unused (matches the PyTorch
    forward). Pass mxu_dtype=jnp.float32 for a full-precision adjacency stream
    (2x HBM bytes) if tighter accuracy on `mean` is required.
    """
    del adj_norm2                               # unused by GGCL_D.forward
    n, f_in = miu.shape
    f_out = weight_miu.shape[1]
    out_dtype = miu.dtype

    pr, tm, pc, tk = _plan_tiles(n)
    fp = max(128, _round_up(f_out, 128))        # lane-dense output width
    pm = 256 if pc % 256 == 0 else pc           # projection row tile

    miu_pad = _pad2(miu, pc, f_in)
    sigma_pad = _pad2(sigma, pc, f_in)
    wmiu_pad = _pad2(weight_miu, f_in, fp)
    wsig_pad = _pad2(weight_sigma, f_in, fp)

    # Adjacency: avoid any host-side pass when no padding is needed (cast per tile
    # in-kernel); otherwise pad + cast in one fused op (bf16 halves the padded stream).
    if pr == n and pc == n:
        adj_in = adj_norm1
    else:
        adj_in = _pad2(adj_norm1, pr, pc).astype(mxu_dtype)

    # --- projection kernel: row-tiled, fully parallel, tiny VMEM footprint --------
    x, sigma_full = pl.pallas_call(
        _make_proj_kernel(gamma),
        out_shape=(jax.ShapeDtypeStruct((pc, fp), mxu_dtype),
                   jax.ShapeDtypeStruct((pc, fp), out_dtype)),
        grid=(pc // pm,),
        in_specs=[
            pl.BlockSpec((pm, f_in), lambda i: (i, 0)),        # miu rows
            pl.BlockSpec((pm, f_in), lambda i: (i, 0)),        # sigma rows
            pl.BlockSpec((f_in, fp), lambda i: (0, 0)),        # W_miu (resident)
            pl.BlockSpec((f_in, fp), lambda i: (0, 0)),        # W_sigma (resident)
        ],
        out_specs=(pl.BlockSpec((pm, fp), lambda i: (i, 0)),
                   pl.BlockSpec((pm, fp), lambda i: (i, 0))),
        compiler_params=pltpu.CompilerParams(
            dimension_semantics=("parallel",)),
    )(miu_pad, sigma_pad, wmiu_pad, wsig_pad)

    # --- aggregation kernel: stream adjacency, resident RHS, f32 accumulation -----
    direct_out = (out_dtype == jnp.float32)
    scratch = [] if direct_out else [pltpu.VMEM((tm, fp), jnp.float32)]

    adj_bytes = np.dtype(adj_in.dtype).itemsize
    mxu_bytes = np.dtype(mxu_dtype).itemsize
    out_bytes = np.dtype(out_dtype).itemsize
    need = (2 * tm * tk * adj_bytes             # double-buffered adjacency stream
            + 2 * pc * fp * mxu_bytes           # resident x (budget 2 buffers)
            + 2 * tm * fp * out_bytes           # output block
            + tm * fp * 4                       # f32 accumulator (scratch path)
            + (4 << 20))                        # headroom
    try:
        cap = int(pltpu.get_tpu_info().vmem_capacity_bytes) * 3 // 4
    except Exception:
        cap = 48 << 20                          # safe on v5e/v6e (128 MiB) & v7x (64 MiB)
    vmem_limit = int(min(max(need, 16 << 20), cap))

    mean_full = pl.pallas_call(
        _make_agg_kernel(tk, direct_out),
        out_shape=jax.ShapeDtypeStruct((pr, fp), out_dtype),
        grid=(pr // tm, pc // tk),
        in_specs=[
            pl.BlockSpec((tm, tk), lambda i, k: (i, k)),       # adjacency tile (stream)
            pl.BlockSpec((pc, fp), lambda i, k: (0, 0)),       # resident RHS (DMA once)
        ],
        out_specs=pl.BlockSpec((tm, fp), lambda i, k: (i, 0)),
        scratch_shapes=scratch,
        compiler_params=pltpu.CompilerParams(
            dimension_semantics=("parallel", "arbitrary"),
            vmem_limit_bytes=vmem_limit),
    )(adj_in, x)

    return mean_full[:n, :f_out], sigma_full[:n, :f_out]


# ---------------------------------------------------------------------------
# Self-test
# ---------------------------------------------------------------------------
def xavier_uniform(key, shape, dtype=jnp.float32):
    fan_in, fan_out = shape
    bound = math.sqrt(6.0 / (fan_in + fan_out))
    return jax.random.uniform(key, shape, dtype=dtype, minval=-bound, maxval=bound)


def _reference(miu, sigma, wm, ws, adj1, gamma):
    miu_p = jax.nn.elu(miu @ wm)
    sig_p = jax.nn.relu(sigma @ ws)
    att = jnp.exp(-gamma * sig_p)
    return adj1 @ (miu_p * att), sig_p


if __name__ == "__main__":
    key = jax.random.PRNGKey(0)
    F_IN, F_OUT, GAMMA = 32, 16, 1.0

    # n=64   : single-block fast path, f32 adjacency streamed directly (no host pass)
    # n=700  : padded tiled path (rows->768, cols->768), host-fused bf16 pad+cast
    # n=2500 : multi-k accumulator path (grid (5,2), tm=512, tk=1280), resident x slicing
    for n in (64, 700, 2500):
        key, k_wm, k_ws, k_miu, k_sig, k_a1, k_a2 = jax.random.split(key, 7)

        weight_miu = xavier_uniform(k_wm, (F_IN, F_OUT))
        weight_sigma = xavier_uniform(k_ws, (F_IN, F_OUT))

        miu = jax.random.normal(k_miu, (n, F_IN), dtype=jnp.float32)
        sigma = jax.nn.softplus(
            jax.random.normal(k_sig, (n, F_IN), dtype=jnp.float32))

        a1 = jax.random.uniform(k_a1, (n, n), dtype=jnp.float32)
        a2 = jax.random.uniform(k_a2, (n, n), dtype=jnp.float32)
        adj_norm1 = a1 / jnp.sum(a1, axis=1, keepdims=True)
        adj_norm2 = a2 / jnp.sum(a2, axis=1, keepdims=True)

        mean_out, sigma_out = ggcl_d(miu, sigma, weight_miu, weight_sigma,
                                     adj_norm1, adj_norm2, gamma=GAMMA)
        mean_out = jax.block_until_ready(mean_out)
        sigma_out = jax.block_until_ready(sigma_out)

        mean_ref, sigma_ref = _reference(miu, sigma, weight_miu, weight_sigma,
                                         adj_norm1, GAMMA)

        assert mean_out.shape == (n, F_OUT) and sigma_out.shape == (n, F_OUT)
        # sigma path runs entirely in f32.
        assert jnp.allclose(sigma_out, sigma_ref, atol=1e-4, rtol=1e-4), f"sigma n={n}"
        # adjacency stream uses bf16 operands (f32 accumulate) -> loosened tolerance.
        assert jnp.allclose(mean_out, mean_ref, atol=3e-2, rtol=3e-2), f"mean n={n}"

    print("KERNEL_OK")
</pallas_src>

<mosaic_0001>
module attributes {stable_mosaic.version = 11 : i64} {
  func.func @kernel(%arg0: i32, %arg1: memref<64x32xf32, #tpu.memory_space<vmem>>, %arg2: memref<64x32xf32, #tpu.memory_space<vmem>>, %arg3: memref<32x128xf32, #tpu.memory_space<vmem>>, %arg4: memref<32x128xf32, #tpu.memory_space<vmem>>, %arg5: memref<64x128xbf16, #tpu.memory_space<vmem>>, %arg6: memref<64x128xf32, #tpu.memory_space<vmem>>) attributes {dimension_semantics = [#tpu.dimension_semantics<parallel>], iteration_bounds = array<i64: 1>, scalar_prefetch = 0 : i64, scratch_operands = 0 : i64, tpu.core_type = #tpu.core_type<tc>, window_params = [{transform_indices = @transform_0, window_bounds = array<i64: 64, 32>}, {transform_indices = @transform_1, window_bounds = array<i64: 64, 32>}, {pipeline_mode = #tpu.pipeline_mode<synchronous>, transform_indices = @transform_2, window_bounds = array<i64: 32, 128>}, {pipeline_mode = #tpu.pipeline_mode<synchronous>, transform_indices = @transform_3, window_bounds = array<i64: 32, 128>}, {transform_indices = @transform_4, window_bounds = array<i64: 64, 128>}, {transform_indices = @transform_5, window_bounds = array<i64: 64, 128>}]} {
    %c0 = arith.constant 0 : index
    %c0_0 = arith.constant 0 : index
    %0 = vector.load %arg1[%c0, %c0_0] : memref<64x32xf32, #tpu.memory_space<vmem>>, vector<64x32xf32>
    %c0_1 = arith.constant 0 : index
    %c0_2 = arith.constant 0 : index
    %1 = vector.load %arg3[%c0_1, %c0_2] : memref<32x128xf32, #tpu.memory_space<vmem>>, vector<32x128xf32>
    %cst = arith.constant dense<0.000000e+00> : vector<64x128xf32>
    %2 = tpu.matmul %0, %1, %cst {dimension_numbers = #tpu.dot_dimension_numbers<[1], [0], [0], [1], [0, 0, 1, 1], [], []>} : vector<64x32xf32>, vector<32x128xf32>, vector<64x128xf32> -> vector<64x128xf32>
    %c0_3 = arith.constant 0 : index
    %c0_4 = arith.constant 0 : index
    %3 = vector.load %arg2[%c0_3, %c0_4] : memref<64x32xf32, #tpu.memory_space<vmem>>, vector<64x32xf32>
    %c0_5 = arith.constant 0 : index
    %c0_6 = arith.constant 0 : index
    %4 = vector.load %arg4[%c0_5, %c0_6] : memref<32x128xf32, #tpu.memory_space<vmem>>, vector<32x128xf32>
    %cst_7 = arith.constant dense<0.000000e+00> : vector<64x128xf32>
    %5 = tpu.matmul %3, %4, %cst_7 {dimension_numbers = #tpu.dot_dimension_numbers<[1], [0], [0], [1], [0, 0, 1, 1], [], []>} : vector<64x32xf32>, vector<32x128xf32>, vector<64x128xf32> -> vector<64x128xf32>
    %cst_8 = arith.constant 0.000000e+00 : f32
    %6 = vector.broadcast %cst_8 : f32 to vector<64x128xf32>
    %7 = arith.cmpf ogt, %2, %6 : vector<64x128xf32>
    %cst_9 = arith.constant 0.000000e+00 : f32
    %8 = vector.broadcast %cst_9 : f32 to vector<64x128xf32>
    %9 = arith.minimumf %2, %8 : vector<64x128xf32>
    %10 = math.exp %9 : vector<64x128xf32>
    %cst_10 = arith.constant 1.000000e+00 : f32
    %11 = vector.broadcast %cst_10 : f32 to vector<64x128xf32>
    %12 = arith.subf %10, %11 : vector<64x128xf32>
    %13 = arith.select %7, %2, %12 : vector<64x128xi1>, vector<64x128xf32>
    %cst_11 = arith.constant 0.000000e+00 : f32
    %14 = vector.broadcast %cst_11 : f32 to vector<64x128xf32>
    %15 = arith.maximumf %5, %14 : vector<64x128xf32>
    %cst_12 = arith.constant -1.000000e+00 : f32
    %16 = vector.broadcast %cst_12 : f32 to vector<64x128xf32>
    %17 = arith.mulf %16, %15 : vector<64x128xf32>
    %18 = math.exp %17 : vector<64x128xf32>
    %c0_13 = arith.constant 0 : index
    %c0_14 = arith.constant 0 : index
    %19 = vector.load %arg6[%c0_13, %c0_14] : memref<64x128xf32, #tpu.memory_space<vmem>>, vector<64x128xf32>
    tpu.vector_store %arg6[%c0_13, %c0_14], %15 {strides = array<i32>} : memref<64x128xf32, #tpu.memory_space<vmem>>, vector<64x128xf32>,
    %20 = arith.mulf %13, %18 : vector<64x128xf32>
    %21 = arith.truncf %20 : vector<64x128xf32> to vector<64x128xbf16>
    %c0_15 = arith.constant 0 : index
    %c0_16 = arith.constant 0 : index
    %22 = vector.load %arg5[%c0_15, %c0_16] : memref<64x128xbf16, #tpu.memory_space<vmem>>, vector<64x128xbf16>
    tpu.vector_store %arg5[%c0_15, %c0_16], %21 {strides = array<i32>} : memref<64x128xbf16, #tpu.memory_space<vmem>>, vector<64x128xbf16>,
    return
  }
  func.func @transform_0(%arg0: i32) -> (i32, i32) {
    %c0_i32 = arith.constant 0 : i32
    %c0_i32_0 = arith.constant 0 : i32
    return %arg0, %c0_i32 : i32, i32
  }
  func.func @transform_1(%arg0: i32) -> (i32, i32) {
    %c0_i32 = arith.constant 0 : i32
    %c0_i32_0 = arith.constant 0 : i32
    return %arg0, %c0_i32 : i32, i32
  }
  func.func @transform_2(%arg0: i32) -> (i32, i32) {
    %c0_i32 = arith.constant 0 : i32
    %c0_i32_0 = arith.constant 0 : i32
    %c0_i32_1 = arith.constant 0 : i32
    return %c0_i32, %c0_i32_0 : i32, i32
  }
  func.func @transform_3(%arg0: i32) -> (i32, i32) {
    %c0_i32 = arith.constant 0 : i32
    %c0_i32_0 = arith.constant 0 : i32
    %c0_i32_1 = arith.constant 0 : i32
    return %c0_i32, %c0_i32_0 : i32, i32
  }
  func.func @transform_4(%arg0: i32) -> (i32, i32) {
    %c0_i32 = arith.constant 0 : i32
    %c0_i32_0 = arith.constant 0 : i32
    return %arg0, %c0_i32 : i32, i32
  }
  func.func @transform_5(%arg0: i32) -> (i32, i32) {
    %c0_i32 = arith.constant 0 : i32
    %c0_i32_0 = arith.constant 0 : i32
    return %arg0, %c0_i32 : i32, i32
  }
}

</mosaic_0001>

<llo_original>
// kernel: tpu_custom_call.1
$region0: #{tpu_custom_call.1}
  #allocation0 [shape = 'u32[]', space=smem, size = 0x4, offset = 0x4, fixed_abs, tag = 'smem constant byte address 0x4 - core index']
  #allocation1 [shape = 'u32[72,128]{1,0:T(1,128)}', space=vmem, size = 0x9000, scoped, tag = 'internal scratch']
  %s0 = inlined_call_operand.vmem [shape: f32[64,32], index: 0, kind: input, shape index: {}]
  %s1 = inlined_call_operand.vmem [shape: f32[64,32], index: 1, kind: input, shape index: {}]
  %s2 = inlined_call_operand.vmem [shape: f32[32,128], index: 2, kind: input, shape index: {}]
  %s3 = inlined_call_operand.vmem [shape: f32[32,128], index: 3, kind: input, shape index: {}]
  %s4 = inlined_call_operand.hbm [shape: bf16[64,128], index: 4, kind: output, shape index: {0}]
  %s5 = inlined_call_operand.hbm [shape: f32[64,128], index: 5, kind: output, shape index: {1}]
  %6 = xla_tuple %s4, %s5
  %s7 = sld [smem:[#allocation0]]
  $region34: #{tpu_custom_call.1} parent=0
    _
  %s9 = ssub.s32 1, %s7
  %s10 = scalar_select 0, %s9, %s7
  $region1: #{tpu_custom_call.1} parent=0
    #allocation2 [shape = 'u8[16384]{0}', space=vmem, size = 0x4000, scoped, tag = 'output window, operand 0, single buffered']
    #allocation3 [shape = 's32[1]{0}', space=sflag, size = 0x4, scoped, tag = 'scoped memory for tpu_custom_call.1']
    #allocation4 [shape = 'u8[32768]{0}', space=vmem, size = 0x8000, scoped, tag = 'output window, operand 1, single buffered']
    #allocation5 [shape = 's32[1]{0}', space=sflag, size = 0x4, scoped, tag = 'scoped memory for tpu_custom_call.1']
    %11 = vsyncpa [#allocation3], 0
    %12 = vsyncpa [#allocation5], 0
    // Predicated region
    $region2: #{tpu_custom_call.1} parent=1 // pred_check
      _
    $region3: #{tpu_custom_call.1} parent=1 // pred_check_branch
      %14 = sbr.rel (0) target = $region5
    $region4: #{tpu_custom_call.1} parent=1 // pred_region
      _
    $region5: #{tpu_custom_call.1} parent=1 // pred_fallthru
      _
    // Predicated region
    $region6: #{tpu_custom_call.1} parent=1 // pred_check
      _
    $region7: #{tpu_custom_call.1} parent=1 // pred_check_branch
      %16 = sbr.rel (0) target = $region9
    $region8: #{tpu_custom_call.1} parent=1 // pred_region
      _
    $region9: #{tpu_custom_call.1} parent=1 // pred_fallthru
      _
    // Predicated region
    $region10: #{tpu_custom_call.1} parent=1 // pred_check
      _
    $region11: #{tpu_custom_call.1} parent=1 // pred_check_branch
      %18 = sbr.rel (0) target = $region13
    $region12: #{tpu_custom_call.1} parent=1 // pred_region
      _
    $region13: #{tpu_custom_call.1} parent=1 // pred_fallthru
      _
    // Predicated region
    $region14: #{tpu_custom_call.1} parent=1 // pred_check
      _
    $region15: #{tpu_custom_call.1} parent=1 // pred_check_branch
      %20 = sbr.rel (0) target = $region17
    $region16: #{tpu_custom_call.1} parent=1 // pred_region
      _
    $region17: #{tpu_custom_call.1} parent=1 // pred_fallthru
      _
    %v21 = vld [vmem:[%s0] sm:$0xff]
    %v22 = vld [vmem:[%s0 + $0x8] sm:$0xff]
    %v23 = vld [vmem:[%s0 + $0x10] sm:$0xff]
    %v24 = vld [vmem:[%s0 + $0x18] sm:$0xff]
    %v25 = vld [vmem:[%s0 + $0x20] sm:$0xff]
    %v26 = vld [vmem:[%s0 + $0x28] sm:$0xff]
    %v27 = vld [vmem:[%s0 + $0x30] sm:$0xff]
    %v28 = vld [vmem:[%s0 + $0x38] sm:$0xff]
    %v29 = vld [vmem:[%s2] sm:$0xff]
    %v30 = vld [vmem:[%s2 + $0x8] sm:$0xff]
    %v31 = vld [vmem:[%s2 + $0x10] sm:$0xff]
    %v32 = vld [vmem:[%s2 + $0x18] sm:$0xff]
    %vm33 = vcmask 261120
    %v35 = vsel %vm33, %v21, 0
    %v38 = vsel %vm33, %v22, 0
    %v41 = vsel %vm33, %v23, 0
    %v44 = vsel %vm33, %v24, 0
    %v47 = vsel %vm33, %v25, 0
    %v50 = vsel %vm33, %v26, 0
    %v53 = vsel %vm33, %v27, 0
    %v56 = vsel %vm33, %v28, 0
    %58 = vmatpush.msra.mxu0 0.0
    %59 = vmatpush.msra.mxu0 0.0
    %60 = vmatpush.msra.mxu0 0.0
    %61 = vmatpush.msra.mxu0 0.0
    %62 = vmatpush.msra.mxu0 0.0
    %63 = vmatpush.msra.mxu0 0.0
    %64 = vmatpush.msra.mxu0 0.0
    %65 = vmatpush.msra.mxu0 0.0
    %66 = vmatpush.msra.mxu0 0.0
    %67 = vmatpush.msra.mxu0 0.0
    %68 = vmatpush.msra.mxu0 0.0
    %69 = vmatpush.msra.mxu0 0.0
    %70 = vmatpush.msra.mxu0 %v32
    %71 = vmatpush.msra.mxu0 %v31
    %72 = vmatpush.msra.mxu0 %v30
    %73 = vmatpush.msra.mxu0 %v29
    %74 = vmatmul.f32.gmra.mxu0 %v35
    %v75 = vpop.f32.mrf.mxu0
    %v76 = vadd.f32 0.0, %v75
    %77 = vmatmul.f32.gmra.mxu0 %v38
    %v78 = vpop.f32.mrf.mxu0
    %v79 = vadd.f32 0.0, %v78
    %80 = vmatmul.f32.gmra.mxu0 %v41
    %v81 = vpop.f32.mrf.mxu0
    %v82 = vadd.f32 0.0, %v81
    %83 = vmatmul.f32.gmra.mxu0 %v44
    %v84 = vpop.f32.mrf.mxu0
    %v85 = vadd.f32 0.0, %v84
    %86 = vmatmul.f32.gmra.mxu0 %v47
    %v87 = vpop.f32.mrf.mxu0
    %v88 = vadd.f32 0.0, %v87
    %89 = vmatmul.f32.gmra.mxu0 %v50
    %v90 = vpop.f32.mrf.mxu0
    %v91 = vadd.f32 0.0, %v90
    %92 = vmatmul.f32.gmra.mxu0 %v53
    %v93 = vpop.f32.mrf.mxu0
    %v94 = vadd.f32 0.0, %v93
    %95 = vmatmul.f32.gmra.mxu0 %v56
    %v96 = vpop.f32.mrf.mxu0
    %v97 = vadd.f32 0.0, %v96
    %98 = vdwg.mxu0
    %v99 = vld [vmem:[%s1] sm:$0xff]
    %v100 = vld [vmem:[%s1 + $0x8] sm:$0xff]
    %v101 = vld [vmem:[%s1 + $0x10] sm:$0xff]
    %v102 = vld [vmem:[%s1 + $0x18] sm:$0xff]
    %v103 = vld [vmem:[%s1 + $0x20] sm:$0xff]
    %v104 = vld [vmem:[%s1 + $0x28] sm:$0xff]
    %v105 = vld [vmem:[%s1 + $0x30] sm:$0xff]
    %v106 = vld [vmem:[%s1 + $0x38] sm:$0xff]
    %v107 = vld [vmem:[%s3] sm:$0xff]
    %v108 = vld [vmem:[%s3 + $0x8] sm:$0xff]
    %v109 = vld [vmem:[%s3 + $0x10] sm:$0xff]
    %v110 = vld [vmem:[%s3 + $0x18] sm:$0xff]
    %v112 = vsel %vm33, %v99, 0
    %v115 = vsel %vm33, %v100, 0
    %v118 = vsel %vm33, %v101, 0
    %v121 = vsel %vm33, %v102, 0
    %v124 = vsel %vm33, %v103, 0
    %v127 = vsel %vm33, %v104, 0
    %v130 = vsel %vm33, %v105, 0
    %v133 = vsel %vm33, %v106, 0
    %135 = vmatpush.msra.mxu0 0.0
    %136 = vmatpush.msra.mxu0 0.0
    %137 = vmatpush.msra.mxu0 0.0
    %138 = vmatpush.msra.mxu0 0.0
    %139 = vmatpush.msra.mxu0 0.0
    %140 = vmatpush.msra.mxu0 0.0
    %141 = vmatpush.msra.mxu0 0.0
    %142 = vmatpush.msra.mxu0 0.0
    %143 = vmatpush.msra.mxu0 0.0
    %144 = vmatpush.msra.mxu0 0.0
    %145 = vmatpush.msra.mxu0 0.0
    %146 = vmatpush.msra.mxu0 0.0
    %147 = vmatpush.msra.mxu0 %v110
    %148 = vmatpush.msra.mxu0 %v109
    %149 = vmatpush.msra.mxu0 %v108
    %150 = vmatpush.msra.mxu0 %v107
    %151 = vmatmul.f32.gmra.mxu0 %v112
    %v152 = vpop.f32.mrf.mxu0
    %v153 = vadd.f32 0.0, %v152
    %154 = vmatmul.f32.gmra.mxu0 %v115
    %v155 = vpop.f32.mrf.mxu0
    %v156 = vadd.f32 0.0, %v155
    %157 = vmatmul.f32.gmra.mxu0 %v118
    %v158 = vpop.f32.mrf.mxu0
    %v159 = vadd.f32 0.0, %v158
    %160 = vmatmul.f32.gmra.mxu0 %v121
    %v161 = vpop.f32.mrf.mxu0
    %v162 = vadd.f32 0.0, %v161
    %163 = vmatmul.f32.gmra.mxu0 %v124
    %v164 = vpop.f32.mrf.mxu0
    %v165 = vadd.f32 0.0, %v164
    %166 = vmatmul.f32.gmra.mxu0 %v127
    %v167 = vpop.f32.mrf.mxu0
    %v168 = vadd.f32 0.0, %v167
    %169 = vmatmul.f32.gmra.mxu0 %v130
    %v170 = vpop.f32.mrf.mxu0
    %v171 = vadd.f32 0.0, %v170
    %172 = vmatmul.f32.gmra.mxu0 %v133
    %v173 = vpop.f32.mrf.mxu0
    %v174 = vadd.f32 0.0, %v173
    %175 = vdwg.mxu0
    %vm176 = vcmp.gt.f32.partialorder %v76, 0.0
    %vm177 = vcmp.gt.f32.partialorder %v79, 0.0
    %vm178 = vcmp.gt.f32.partialorder %v82, 0.0
    %vm179 = vcmp.gt.f32.partialorder %v85, 0.0
    %vm180 = vcmp.gt.f32.partialorder %v88, 0.0
    %vm181 = vcmp.gt.f32.partialorder %v91, 0.0
    %vm182 = vcmp.gt.f32.partialorder %v94, 0.0
    %vm183 = vcmp.gt.f32.partialorder %v97, 0.0
    %v184 = vmin.f32 %v76, 0.0
    %v185 = vmin.f32 %v79, 0.0
    %v186 = vmin.f32 %v82, 0.0
    %v187 = vmin.f32 %v85, 0.0
    %v188 = vmin.f32 %v88, 0.0
    %v189 = vmin.f32 %v91, 0.0
    %v190 = vmin.f32 %v94, 0.0
    %v191 = vmin.f32 %v97, 0.0
    %v192 = vmul.f32 %v184, 1.442695
    %v193 = vpow.pop %v192
    %v194 = vmul.f32 %v185, 1.442695
    %v195 = vpow.pop %v194
    %v196 = vmul.f32 %v186, 1.442695
    %v197 = vpow.pop %v196
    %v198 = vmul.f32 %v187, 1.442695
    %v199 = vpow.pop %v198
    %v200 = vmul.f32 %v188, 1.442695
    %v201 = vpow.pop %v200
    %v202 = vmul.f32 %v189, 1.442695
    %v203 = vpow.pop %v202
    %v204 = vmul.f32 %v190, 1.442695
    %v205 = vpow.pop %v204
    %v206 = vmul.f32 %v191, 1.442695
    %v207 = vpow.pop %v206
    %v208 = vsub.f32 %v193, 1.0
    %v209 = vsub.f32 %v195, 1.0
    %v210 = vsub.f32 %v197, 1.0
    %v211 = vsub.f32 %v199, 1.0
    %v212 = vsub.f32 %v201, 1.0
    %v213 = vsub.f32 %v203, 1.0
    %v214 = vsub.f32 %v205, 1.0
    %v215 = vsub.f32 %v207, 1.0
    %v216 = vsel %vm176, %v76, %v208
    %v217 = vsel %vm177, %v79, %v209
    %v218 = vsel %vm178, %v82, %v210
    %v219 = vsel %vm179, %v85, %v211
    %v220 = vsel %vm180, %v88, %v212
    %v221 = vsel %vm181, %v91, %v213
    %v222 = vsel %vm182, %v94, %v214
    %v223 = vsel %vm183, %v97, %v215
    %v224 = vmax.f32 %v153, 0.0
    %v225 = vmax.f32 %v156, 0.0
    %v226 = vmax.f32 %v159, 0.0
    %v227 = vmax.f32 %v162, 0.0
    %v228 = vmax.f32 %v165, 0.0
    %v229 = vmax.f32 %v168, 0.0
    %v230 = vmax.f32 %v171, 0.0
    %v231 = vmax.f32 %v174, 0.0
    %v232 = vmul.f32 %v224, -1.0
    %v233 = vmul.f32 %v225, -1.0
    %v234 = vmul.f32 %v226, -1.0
    %v235 = vmul.f32 %v227, -1.0
    %v236 = vmul.f32 %v228, -1.0
    %v237 = vmul.f32 %v229, -1.0
    %v238 = vmul.f32 %v230, -1.0
    %v239 = vmul.f32 %v231, -1.0
    %v240 = vmul.f32 %v232, 1.442695
    %v241 = vpow.pop %v240
    %v242 = vmul.f32 %v233, 1.442695
    %v243 = vpow.pop %v242
    %v244 = vmul.f32 %v234, 1.442695
    %v245 = vpow.pop %v244
    %v246 = vmul.f32 %v235, 1.442695
    %v247 = vpow.pop %v246
    %v248 = vmul.f32 %v236, 1.442695
    %v249 = vpow.pop %v248
    %v250 = vmul.f32 %v237, 1.442695
    %v251 = vpow.pop %v250
    %v252 = vmul.f32 %v238, 1.442695
    %v253 = vpow.pop %v252
    %v254 = vmul.f32 %v239, 1.442695
    %v255 = vpow.pop %v254
    %256 = vst [vmem:[#allocation4] sm:$0xff] %v224
    %257 = vst [vmem:[#allocation4 + $0x8] sm:$0xff] %v225
    %258 = vst [vmem:[#allocation4 + $0x10] sm:$0xff] %v226
    %259 = vst [vmem:[#allocation4 + $0x18] sm:$0xff] %v227
    %260 = vst [vmem:[#allocation4 + $0x20] sm:$0xff] %v228
    %261 = vst [vmem:[#allocation4 + $0x28] sm:$0xff] %v229
    %262 = vst [vmem:[#allocation4 + $0x30] sm:$0xff] %v230
    %263 = vst [vmem:[#allocation4 + $0x38] sm:$0xff] %v231
    %v264 = vmul.f32 %v216, %v241
    %v265 = vmul.f32 %v217, %v243
    %v266 = vmul.f32 %v218, %v245
    %v267 = vmul.f32 %v219, %v247
    %v268 = vmul.f32 %v220, %v249
    %v269 = vmul.f32 %v221, %v251
    %v270 = vmul.f32 %v222, %v253
    %v271 = vmul.f32 %v223, %v255
    %v272 = vpack.c.bf16 %v264, %v264
    %v273 = vpack.c.bf16 %v265, %v265
    %v274 = vpack.c.bf16 %v266, %v266
    %v275 = vpack.c.bf16 %v267, %v267
    %v276 = vpack.c.bf16 %v268, %v268
    %v277 = vpack.c.bf16 %v269, %v269
    %v278 = vpack.c.bf16 %v270, %v270
    %v279 = vpack.c.bf16 %v271, %v271
    %280 = vst [vmem:[#allocation2] sm:$0xf] %v272
    %281 = vst [vmem:[#allocation2 + $0x4] sm:$0xf] %v273
    %282 = vst [vmem:[#allocation2 + $0x8] sm:$0xf] %v274
    %283 = vst [vmem:[#allocation2 + $0xc] sm:$0xf] %v275
    %284 = vst [vmem:[#allocation2 + $0x10] sm:$0xf] %v276
    %285 = vst [vmem:[#allocation2 + $0x14] sm:$0xf] %v277
    %286 = vst [vmem:[#allocation2 + $0x18] sm:$0xf] %v278
    %287 = vst [vmem:[#allocation2 + $0x1c] sm:$0xf] %v279
    // Predicated region
    $region18: #{tpu_custom_call.1} parent=1 // pred_check
      _
    $region19: #{tpu_custom_call.1} parent=1 // pred_check_branch
      %289 = sbr.rel (0) target = $region21
    $region20: #{tpu_custom_call.1} parent=1 // pred_region
      %291 = vsyncadd [#allocation3], 0
      %s292 = sshll.u32 [#allocation2], 4
      %s293 = int_to_ptr.vmem [resolvable:$true] %s292
      %s294 = sshll.u32 %s4, 4
      %s295 = int_to_ptr.hbm [resolvable:$true] %s294
      %300 = dma.vmem_to_hbm [thread:$0]  %s293, 512, %s295, [#allocation3], 64, 64, 4
    $region21: #{tpu_custom_call.1} parent=1 // pred_fallthru
      _
    // Predicated region
    $region22: #{tpu_custom_call.1} parent=1 // pred_check
      _
    $region23: #{tpu_custom_call.1} parent=1 // pred_check_branch
      %302 = sbr.rel (0) target = $region25
    $region24: #{tpu_custom_call.1} parent=1 // pred_region
      %304 = vsyncadd [#allocation5], 0
      %s305 = sshll.u32 [#allocation4], 4
      %s306 = int_to_ptr.vmem [resolvable:$true] %s305
      %s307 = sshll.u32 %s5, 4
      %s308 = int_to_ptr.hbm [resolvable:$true] %s307
      %313 = dma.vmem_to_hbm [thread:$0]  %s306, 1024, %s308, [#allocation5], 128, 128, 8
    $region25: #{tpu_custom_call.1} parent=1 // pred_fallthru
      _
    // Predicated region
    $region26: #{tpu_custom_call.1} parent=1 // pred_check
      _
    $region27: #{tpu_custom_call.1} parent=1 // pred_check_branch
      %315 = sbr.rel (0) target = $region29
    $region28: #{tpu_custom_call.1} parent=1 // pred_region
      %317 = dma.done [#allocation3], 512
    $region29: #{tpu_custom_call.1} parent=1 // pred_fallthru
      _
    // Predicated region
    $region30: #{tpu_custom_call.1} parent=1 // pred_check
      _
    $region31: #{tpu_custom_call.1} parent=1 // pred_check_branch
      %319 = sbr.rel (0) target = $region33
    $region32: #{tpu_custom_call.1} parent=1 // pred_region
      %321 = dma.done [#allocation5], 1024
    $region33: #{tpu_custom_call.1} parent=1 // pred_fallthru
      _
    %322 = vsyncpa [#allocation3], 1
    %323 = vsyncpa [#allocation5], 1

</llo_original>
